<compile_context>
chip_gen: v7x
topology: tpu7x:2x2x1
jax: 0.10.0
libtpu: 0.0.40
codegen_flags: <defaults>
</compile_context>

<pallas_src>
import jax
import jax.numpy as jnp
from jax.experimental import pallas as pl
from jax.experimental.pallas import tpu as pltpu


def _residual_linear_kernel(x_ref, wt_ref, o_ref, acc_ref):
    """acc += x_tile @ Wt_tile over k; residual folded in at k == j; store at k == last."""
    j = pl.program_id(1)
    k = pl.program_id(2)

    @pl.when(k == 0)
    def _():
        acc_ref[...] = jnp.zeros_like(acc_ref)

    # x_ref: (tm, tk), wt_ref: (tk, tn) (weight already transposed to (D_in, D_out)).
    acc_ref[...] += jnp.dot(
        x_ref[...], wt_ref[...], preferred_element_type=jnp.float32
    )

    # Residual fold: with tn == tk the LHS x tile at k == j is exactly the (i, j)
    # residual tile of x. Added in f32 before the downcast.
    @pl.when(k == j)
    def _():
        acc_ref[...] += x_ref[...].astype(jnp.float32)

    @pl.when(k == pl.num_programs(2) - 1)
    def _():
        o_ref[...] = acc_ref[...].astype(o_ref.dtype)


def _round_up(v, m):
    return (v + m - 1) // m * m


def _pick_tile_div(size, candidates):
    for c in candidates:
        if size % c == 0:
            return c
    return size


def _pick_tm(B, min_sub, d_pad):
    """Pick tm minimizing an HBM-traffic proxy: weight re-streams + x/out traffic."""
    candidates = [c for c in (512, 256, 128, 64, 32, 16, 8) if c >= min_sub]
    best_tm, best_bpad, best_cost = None, None, None
    for c in candidates:  # descending -> ties keep the larger tile (fewer grid steps)
        n_i = -(-max(B, 1) // c)          # ceil(B / c)
        b_pad = n_i * c
        cost = n_i * d_pad * d_pad + 2 * b_pad * d_pad
        if best_cost is None or cost < best_cost:
            best_tm, best_bpad, best_cost = c, b_pad, cost
    return best_tm, best_bpad


def residual_linear(x, weight):
    """
    Residual(nn.Linear(D, D, bias=False)) forward pass.

    Args:
        x:      (..., D) input.
        weight: (D_out, D_in) PyTorch-convention Linear weight, D_out == D_in == D.

    Returns:
        (..., D) output = x @ weight.T + x
    """
    *lead, D = x.shape
    assert weight.shape == (D, D), "Residual requires fn output dim == input dim"

    x2 = x.reshape(-1, D)
    B = x2.shape[0]
    itemsize = jnp.dtype(x.dtype).itemsize
    min_sub = {4: 8, 2: 16, 1: 32}.get(itemsize, 8)

    # ---- Tile selection -----------------------------------------------------
    D_pad = _round_up(max(D, 128), 128)
    tn = tk = _pick_tile_div(D_pad, (512, 256, 128))
    tm, B_pad = _pick_tm(B, min_sub, D_pad)

    # Guarantee >= 2 points on the parallel (i, j) grid so v7x's 2 TensorCores
    # both get work (negligible effect on single-TC v5e/v6e).
    if (B_pad // tm) * (D_pad // tn) == 1 and tn >= 256:
        tn = tk = tn // 2

    # The k == j residual fold relies on the j and k axes tiling D identically.
    assert tn == tk, "residual fold requires tn == tk"

    # ---- Padding (zero-pad is exact: padded K cols contribute 0; padded rows/cols sliced off)
    if (B_pad, D_pad) != (B, D):
        x_p = jnp.pad(x2, ((0, B_pad - B), (0, D_pad - D)))
    else:
        x_p = x2
    # One-time host-side transpose to (D_in, D_out): amortized over B_pad/tm weight
    # re-streams and keeps the in-kernel dot a plain MXU matmul (no XLU transpose).
    wt = weight.T
    if D_pad != D:
        wt_p = jnp.pad(wt, ((0, D_pad - D), (0, D_pad - D)))
    else:
        wt_p = wt

    grid = (B_pad // tm, D_pad // tn, D_pad // tk)

    # ---- Weight BlockSpec (optionally triple-buffered for tiny-tm, deep-K regime)
    w_idx = lambda i, j, k: (k, j)
    w_spec = pl.BlockSpec((tk, tn), w_idx)
    n_w_bufs = 2
    if tm <= 32 and grid[2] >= 4 and hasattr(pl, "Buffered"):
        try:
            w_spec = pl.BlockSpec((tk, tn), w_idx, pipeline_mode=pl.Buffered(3))
            n_w_bufs = 3
        except TypeError:
            w_spec = pl.BlockSpec((tk, tn), w_idx)

    # ---- Generation-aware VMEM budget --------------------------------------
    vmem_need = (
        2 * tm * tk * itemsize            # x tiles, double-buffered
        + n_w_bufs * tk * tn * itemsize   # weight tiles
        + 2 * tm * tn * itemsize          # output tiles, double-buffered
        + tm * tn * 4                     # f32 accumulator scratch
    )
    try:
        vmem_cap = int(pltpu.get_tpu_info().vmem_capacity_bytes)
    except Exception:
        vmem_cap = 64 * 1024 * 1024       # conservative (v7x per-TC physical VMEM)
    vmem_limit = int(min(max(2 * vmem_need, 32 * 1024 * 1024), 0.65 * vmem_cap))
    vmem_limit = max(vmem_limit, vmem_need + (2 << 20))

    cost = pl.CostEstimate(
        flops=2 * B_pad * D_pad * D_pad,
        transcendentals=0,
        bytes_accessed=(
            B_pad * D_pad                       # x read (once; residual is folded)
            + (B_pad // tm) * D_pad * D_pad     # weight re-streamed per i block
            + B_pad * D_pad                     # output write
        ) * itemsize,
    )

    out_p = pl.pallas_call(
        _residual_linear_kernel,
        out_shape=jax.ShapeDtypeStruct((B_pad, D_pad), x.dtype),
        grid_spec=pltpu.PrefetchScalarGridSpec(
            num_scalar_prefetch=0,
            grid=grid,
            in_specs=[
                pl.BlockSpec((tm, tk), lambda i, j, k: (i, k)),  # x (LHS + residual)
                w_spec,                                          # W^T tile (k, j)
            ],
            out_specs=pl.BlockSpec((tm, tn), lambda i, j, k: (i, j)),
            scratch_shapes=[pltpu.VMEM((tm, tn), jnp.float32)],
        ),
        compiler_params=pltpu.CompilerParams(
            dimension_semantics=("parallel", "parallel", "arbitrary"),
            vmem_limit_bytes=vmem_limit,
        ),
        cost_estimate=cost,
    )(x_p, wt_p)

    return out_p[:B, :D].reshape(*lead, D)


if __name__ == "__main__":
    key = jax.random.PRNGKey(0)
    kx, kw, kx2, kw2, kx3, kw3 = jax.random.split(key, 6)

    # 1) Docstring-like shape: Residual(nn.Linear(D, D, bias=False)) on (2, D).
    B, D = 2, 32
    x = jax.random.normal(kx, (B, D), dtype=jnp.float32)
    w = jax.random.normal(kw, (D, D), dtype=jnp.float32) * (1.0 / jnp.sqrt(D))
    out = jax.block_until_ready(residual_linear(x, w))
    ref = x @ w.T + x
    assert out.shape == (B, D)
    assert jnp.allclose(out, ref, atol=1e-5, rtol=1e-5), "mismatch vs reference (small)"

    # 2) Multi-(j, k) grid + K-epilogue + residual fold path (D_pad=384 -> 128 tiles).
    B2, D2 = 8, 384
    x2 = jax.random.normal(kx2, (B2, D2), dtype=jnp.float32)
    w2 = jax.random.normal(kw2, (D2, D2), dtype=jnp.float32) * (1.0 / jnp.sqrt(D2))
    out2 = jax.block_until_ready(residual_linear(x2, w2))
    ref2 = x2 @ w2.T + x2
    assert out2.shape == (B2, D2)
    assert jnp.allclose(out2, ref2, atol=2e-2, rtol=2e-2), "mismatch vs reference (tiled)"

    # 3) Awkward (non-power-of-two) batch: exercises the traffic-model tile picker,
    #    row padding, and the >=2-parallel-points tn split.
    B3, D3 = 40, 256
    x3 = jax.random.normal(kx3, (B3, D3), dtype=jnp.float32)
    w3 = jax.random.normal(kw3, (D3, D3), dtype=jnp.float32) * (1.0 / jnp.sqrt(D3))
    out3 = jax.block_until_ready(residual_linear(x3, w3))
    ref3 = x3 @ w3.T + x3
    assert out3.shape == (B3, D3)
    assert jnp.allclose(out3, ref3, atol=2e-2, rtol=2e-2), "mismatch vs reference (awkward B)"

    print("KERNEL_OK")
</pallas_src>

<mosaic_0001>
module attributes {stable_mosaic.version = 11 : i64} {
  func.func @_residual_linear_kernel(%arg0: i32, %arg1: i32, %arg2: i32, %arg3: memref<8x128xf32, #tpu.memory_space<vmem>>, %arg4: memref<128x128xf32, #tpu.memory_space<vmem>>, %arg5: memref<8x128xf32, #tpu.memory_space<vmem>>, %arg6: memref<8x128xf32, #tpu.memory_space<vmem>>) attributes {dimension_semantics = [#tpu.dimension_semantics<parallel>, #tpu.dimension_semantics<parallel>, #tpu.dimension_semantics<arbitrary>], iteration_bounds = array<i64: 1, 1, 1>, scalar_prefetch = 0 : i64, scratch_operands = 1 : i64, tpu.core_type = #tpu.core_type<tc>, window_params = [{transform_indices = @transform_0, window_bounds = array<i64: 8, 128>}, {transform_indices = @transform_1, window_bounds = array<i64: 128, 128>}, {transform_indices = @transform_2, window_bounds = array<i64: 8, 128>}]} {
    %c0_i32 = arith.constant 0 : i32
    %0 = arith.cmpi eq, %arg2, %c0_i32 : i32
    %1 = arith.extui %0 : i1 to i32
    %c0_i32_0 = arith.constant 0 : i32
    %2 = arith.cmpi ne, %1, %c0_i32_0 : i32
    scf.if %2 {
      %cst_11 = arith.constant 0.000000e+00 : f32
      %15 = vector.broadcast %cst_11 : f32 to vector<8x128xf32>
      %c0_12 = arith.constant 0 : index
      %c0_13 = arith.constant 0 : index
      %16 = vector.load %arg6[%c0_12, %c0_13] : memref<8x128xf32, #tpu.memory_space<vmem>>, vector<8x128xf32>
      tpu.vector_store %arg6[%c0_12, %c0_13], %15 {strides = array<i32>} : memref<8x128xf32, #tpu.memory_space<vmem>>, vector<8x128xf32>,
    } else {
    }
    %c0 = arith.constant 0 : index
    %c0_1 = arith.constant 0 : index
    %3 = vector.load %arg6[%c0, %c0_1] : memref<8x128xf32, #tpu.memory_space<vmem>>, vector<8x128xf32>
    %c0_2 = arith.constant 0 : index
    %c0_3 = arith.constant 0 : index
    %4 = vector.load %arg3[%c0_2, %c0_3] : memref<8x128xf32, #tpu.memory_space<vmem>>, vector<8x128xf32>
    %c0_4 = arith.constant 0 : index
    %c0_5 = arith.constant 0 : index
    %5 = vector.load %arg4[%c0_4, %c0_5] : memref<128x128xf32, #tpu.memory_space<vmem>>, vector<128x128xf32>
    %cst = arith.constant dense<0.000000e+00> : vector<8x128xf32>
    %6 = tpu.matmul %4, %5, %cst {dimension_numbers = #tpu.dot_dimension_numbers<[1], [0], [0], [1], [0, 0, 1, 1], [], []>} : vector<8x128xf32>, vector<128x128xf32>, vector<8x128xf32> -> vector<8x128xf32>
    %7 = arith.addf %3, %6 : vector<8x128xf32>
    %c0_6 = arith.constant 0 : index
    %c0_7 = arith.constant 0 : index
    %8 = vector.load %arg6[%c0_6, %c0_7] : memref<8x128xf32, #tpu.memory_space<vmem>>, vector<8x128xf32>
    tpu.vector_store %arg6[%c0_6, %c0_7], %7 {strides = array<i32>} : memref<8x128xf32, #tpu.memory_space<vmem>>, vector<8x128xf32>,
    %9 = arith.cmpi eq, %arg2, %arg1 : i32
    %10 = arith.extui %9 : i1 to i32
    %c0_i32_8 = arith.constant 0 : i32
    %11 = arith.cmpi ne, %10, %c0_i32_8 : i32
    scf.if %11 {
      %c0_11 = arith.constant 0 : index
      %c0_12 = arith.constant 0 : index
      %15 = vector.load %arg6[%c0_11, %c0_12] : memref<8x128xf32, #tpu.memory_space<vmem>>, vector<8x128xf32>
      %c0_13 = arith.constant 0 : index
      %c0_14 = arith.constant 0 : index
      %16 = vector.load %arg3[%c0_13, %c0_14] : memref<8x128xf32, #tpu.memory_space<vmem>>, vector<8x128xf32>
      %17 = arith.addf %15, %16 : vector<8x128xf32>
      %c0_15 = arith.constant 0 : index
      %c0_16 = arith.constant 0 : index
      %18 = vector.load %arg6[%c0_15, %c0_16] : memref<8x128xf32, #tpu.memory_space<vmem>>, vector<8x128xf32>
      tpu.vector_store %arg6[%c0_15, %c0_16], %17 {strides = array<i32>} : memref<8x128xf32, #tpu.memory_space<vmem>>, vector<8x128xf32>,
    } else {
    }
    %c0_i32_9 = arith.constant 0 : i32
    %12 = arith.cmpi eq, %arg2, %c0_i32_9 : i32
    %13 = arith.extui %12 : i1 to i32
    %c0_i32_10 = arith.constant 0 : i32
    %14 = arith.cmpi ne, %13, %c0_i32_10 : i32
    scf.if %14 {
      %c0_11 = arith.constant 0 : index
      %c0_12 = arith.constant 0 : index
      %15 = vector.load %arg6[%c0_11, %c0_12] : memref<8x128xf32, #tpu.memory_space<vmem>>, vector<8x128xf32>
      %c0_13 = arith.constant 0 : index
      %c0_14 = arith.constant 0 : index
      %16 = vector.load %arg5[%c0_13, %c0_14] : memref<8x128xf32, #tpu.memory_space<vmem>>, vector<8x128xf32>
      tpu.vector_store %arg5[%c0_13, %c0_14], %15 {strides = array<i32>} : memref<8x128xf32, #tpu.memory_space<vmem>>, vector<8x128xf32>,
    } else {
    }
    return
  }
  func.func @transform_0(%arg0: i32, %arg1: i32, %arg2: i32) -> (i32, i32) {
    %c0_i32 = arith.constant 0 : i32
    return %arg0, %arg2 : i32, i32
  }
  func.func @transform_1(%arg0: i32, %arg1: i32, %arg2: i32) -> (i32, i32) {
    %c0_i32 = arith.constant 0 : i32
    return %arg2, %arg1 : i32, i32
  }
  func.func @transform_2(%arg0: i32, %arg1: i32, %arg2: i32) -> (i32, i32) {
    %c0_i32 = arith.constant 0 : i32
    return %arg0, %arg1 : i32, i32
  }
}

</mosaic_0001>

<llo_original>
// kernel: tpu_custom_call.1
$region0: #{tpu_custom_call.1}
  #allocation0 [shape = 'u32[]', space=smem, size = 0x4, offset = 0x4, fixed_abs, tag = 'smem constant byte address 0x4 - core index']
  #allocation1 [shape = 'u32[144,128]{1,0:T(1,128)}', space=vmem, size = 0x12000, scoped, tag = 'internal scratch']
  #allocation2 [shape = 'f32[8,128]{1,0:T(8,128)}', space=vmem, size = 0x1000, scoped, tag = 'scratch operand']
  %s0 = inlined_call_operand.hbm [shape: f32[8,128], index: 0, kind: input, shape index: {}]
  %s1 = inlined_call_operand.hbm [shape: f32[128,128], index: 1, kind: input, shape index: {}]
  %s2 = inlined_call_operand.hbm [shape: f32[8,128], index: 2, kind: output, shape index: {}]
  %s3 = sld [smem:[#allocation0]]
  $region38: #{tpu_custom_call.1} parent=0
    _
  %s5 = ssub.s32 1, %s3
  %s6 = scalar_select 0, %s5, %s3
  $region1: #{tpu_custom_call.1} parent=0
    #allocation3 [shape = 'u8[4096]{0}', space=vmem, size = 0x1000, scoped, tag = 'input window, operand 0, single buffered']
    #allocation4 [shape = 's32[1]{0}', space=sflag, size = 0x4, scoped, tag = 'scoped memory for tpu_custom_call.1']
    #allocation5 [shape = 's32[1]{0}', space=sflag, size = 0x4, scoped, tag = 'scoped memory for tpu_custom_call.1']
    #allocation6 [shape = 'u8[65536]{0}', space=vmem, size = 0x10000, scoped, tag = 'input window, operand 1, single buffered']
    #allocation7 [shape = 's32[1]{0}', space=sflag, size = 0x4, scoped, tag = 'scoped memory for tpu_custom_call.1']
    #allocation8 [shape = 'u8[4096]{0}', space=vmem, size = 0x1000, scoped, tag = 'output window, operand 0, single buffered']
    %7 = vsyncpa [#allocation4], 0
    %8 = vsyncpa [#allocation7], 0
    %9 = vsyncpa [#allocation5], 0
    // Predicated region
    $region2: #{tpu_custom_call.1} parent=1 // pred_check
      _
    $region3: #{tpu_custom_call.1} parent=1 // pred_check_branch
      %11 = sbr.rel (0) target = $region5
    $region4: #{tpu_custom_call.1} parent=1 // pred_region
      %s13 = ssub.s32 128, 128
      %14 = vsyncadd [#allocation4], %s13
      %s16 = sshll.u32 [#allocation3], 4
      %s17 = int_to_ptr.vmem [resolvable:$true] %s16
      %19 = dma.hbm_to_vmem [thread:$0]  %s0, 128, %s17, [#allocation4]
    $region5: #{tpu_custom_call.1} parent=1 // pred_fallthru
      _
    // Predicated region
    $region6: #{tpu_custom_call.1} parent=1 // pred_check
      _
    $region7: #{tpu_custom_call.1} parent=1 // pred_check_branch
      %21 = sbr.rel (0) target = $region9
    $region8: #{tpu_custom_call.1} parent=1 // pred_region
      %s23 = ssub.s32 2048, 2048
      %24 = vsyncadd [#allocation7], %s23
      %s25 = sshll.u32 [#allocation6], 4
      %s26 = int_to_ptr.vmem [resolvable:$true] %s25
      %31 = dma.hbm_to_vmem [thread:$0]  %s1, 2048, %s26, [#allocation7], 128, 128, 8
    $region9: #{tpu_custom_call.1} parent=1 // pred_fallthru
      _
    // Predicated region
    $region10: #{tpu_custom_call.1} parent=1 // pred_check
      _
    $region11: #{tpu_custom_call.1} parent=1 // pred_check_branch
      %33 = sbr.rel (0) target = $region13
    $region12: #{tpu_custom_call.1} parent=1 // pred_region
      %34 = dma.done [#allocation4], 128
    $region13: #{tpu_custom_call.1} parent=1 // pred_fallthru
      _
    // Predicated region
    $region14: #{tpu_custom_call.1} parent=1 // pred_check
      _
    $region15: #{tpu_custom_call.1} parent=1 // pred_check_branch
      %36 = sbr.rel (0) target = $region17
    $region16: #{tpu_custom_call.1} parent=1 // pred_region
      %37 = dma.done [#allocation7], 2048
    $region17: #{tpu_custom_call.1} parent=1 // pred_fallthru
      _
    %p38 = scmp.eq.s32.totalorder 0, 0
    // Predicated region
    $region18: #{tpu_custom_call.1} parent=1 // pred_check
      %p39 = pneg %p38
    $region19: #{tpu_custom_call.1} parent=1 // pred_check_branch
      %41 = sbr.rel (%p39) target = $region21
    $region20: #{tpu_custom_call.1} parent=1 // pred_region
      %42 = vst [vmem:[#allocation2] sm:$0xff] 0.0
    $region21: #{tpu_custom_call.1} parent=1 // pred_fallthru
      _
    %v43 = vld [vmem:[#allocation2] sm:$0xff]
    %v44 = vld [vmem:[#allocation3] sm:$0xff]
    %v45 = vld [vmem:[#allocation6] sm:$0xff]
    %v46 = vld [vmem:[#allocation6 + $0x8] sm:$0xff]
    %v47 = vld [vmem:[#allocation6 + $0x10] sm:$0xff]
    %v48 = vld [vmem:[#allocation6 + $0x18] sm:$0xff]
    %v49 = vld [vmem:[#allocation6 + $0x20] sm:$0xff]
    %v50 = vld [vmem:[#allocation6 + $0x28] sm:$0xff]
    %v51 = vld [vmem:[#allocation6 + $0x30] sm:$0xff]
    %v52 = vld [vmem:[#allocation6 + $0x38] sm:$0xff]
    %v53 = vld [vmem:[#allocation6 + $0x40] sm:$0xff]
    %v54 = vld [vmem:[#allocation6 + $0x48] sm:$0xff]
    %v55 = vld [vmem:[#allocation6 + $0x50] sm:$0xff]
    %v56 = vld [vmem:[#allocation6 + $0x58] sm:$0xff]
    %v57 = vld [vmem:[#allocation6 + $0x60] sm:$0xff]
    %v58 = vld [vmem:[#allocation6 + $0x68] sm:$0xff]
    %v59 = vld [vmem:[#allocation6 + $0x70] sm:$0xff]
    %v60 = vld [vmem:[#allocation6 + $0x78] sm:$0xff]
    %61 = vmatprep.subr.mxu0 0.0
    %62 = vmatpush1.msra.mxu0 %v45
    %63 = vmatprep.subr.mxu0 0.0
    %64 = vmatpush1.msra.mxu0 %v46
    %65 = vmatprep.subr.mxu0 0.0
    %66 = vmatpush1.msra.mxu0 %v47
    %67 = vmatprep.subr.mxu0 0.0
    %68 = vmatpush1.msra.mxu0 %v48
    %69 = vmatprep.subr.mxu0 0.0
    %70 = vmatpush1.msra.mxu0 %v49
    %71 = vmatprep.subr.mxu0 0.0
    %72 = vmatpush1.msra.mxu0 %v50
    %73 = vmatprep.subr.mxu0 0.0
    %74 = vmatpush1.msra.mxu0 %v51
    %75 = vmatprep.subr.mxu0 0.0
    %76 = vmatpush1.msra.mxu0 %v52
    %77 = vmatprep.subr.mxu0 0.0
    %78 = vmatpush1.msra.mxu0 %v53
    %79 = vmatprep.subr.mxu0 0.0
    %80 = vmatpush1.msra.mxu0 %v54
    %81 = vmatprep.subr.mxu0 0.0
    %82 = vmatpush1.msra.mxu0 %v55
    %83 = vmatprep.subr.mxu0 0.0
    %84 = vmatpush1.msra.mxu0 %v56
    %85 = vmatprep.subr.mxu0 0.0
    %86 = vmatpush1.msra.mxu0 %v57
    %87 = vmatprep.subr.mxu0 0.0
    %88 = vmatpush1.msra.mxu0 %v58
    %89 = vmatprep.subr.mxu0 0.0
    %90 = vmatpush1.msra.mxu0 %v59
    %91 = vmatprep.subr.mxu0 0.0
    %92 = vmatpush1.msra.mxu0 %v60
    %93 = vmatprep.subr.mxu0 0.0
    %94 = vmatpush1.msra.mxu0 0.0
    %95 = vmatprep.subr.mxu0 0.0
    %96 = vmatpush1.msra.mxu0 0.0
    %97 = vmatprep.subr.mxu0 0.0
    %98 = vmatpush1.msra.mxu0 0.0
    %99 = vmatprep.subr.mxu0 0.0
    %100 = vmatpush1.msra.mxu0 0.0
    %101 = vmatprep.subr.mxu0 0.0
    %102 = vmatpush1.msra.mxu0 0.0
    %103 = vmatprep.subr.mxu0 0.0
    %104 = vmatpush1.msra.mxu0 0.0
    %105 = vmatprep.subr.mxu0 0.0
    %106 = vmatpush1.msra.mxu0 0.0
    %107 = vmatprep.subr.mxu0 0.0
    %108 = vmatpush1.msra.mxu0 0.0
    %109 = vmatprep.subr.mxu0 0.0
    %110 = vmatpush1.msra.mxu0 0.0
    %111 = vmatprep.subr.mxu0 0.0
    %112 = vmatpush1.msra.mxu0 0.0
    %113 = vmatprep.subr.mxu0 0.0
    %114 = vmatpush1.msra.mxu0 0.0
    %115 = vmatprep.subr.mxu0 0.0
    %116 = vmatpush1.msra.mxu0 0.0
    %117 = vmatprep.subr.mxu0 0.0
    %118 = vmatpush1.msra.mxu0 0.0
    %119 = vmatprep.subr.mxu0 0.0
    %120 = vmatpush1.msra.mxu0 0.0
    %121 = vmatprep.subr.mxu0 0.0
    %122 = vmatpush1.msra.mxu0 0.0
    %123 = vmatprep.subr.mxu0 0.0
    %124 = vmatpush1.msra.mxu0 0.0
    %125 = vmatprep.mubr.f32.mxu0 0.0
    %126 = vmatmul.mubr.f32.gmra.mrb[0].mxu0 %v44
    %v127 = vpop.f32.mrb[0].mxu0
    %v128 = vadd.f32 0.0, %v127
    %v129 = vpop.f32.mrb[0].mxu0
    %130 = vdwg.mxu0
    %v131 = vadd.f32 %v43, %v128
    %132 = vst [vmem:[#allocation2] sm:$0xff] %v131
    %p133 = scmp.eq.s32.totalorder 0, 0
    // Predicated region
    $region22: #{tpu_custom_call.1} parent=1 // pred_check
      %p134 = pneg %p133
    $region23: #{tpu_custom_call.1} parent=1 // pred_check_branch
      %136 = sbr.rel (%p134) target = $region25
    $region24: #{tpu_custom_call.1} parent=1 // pred_region
      %v137 = vld [vmem:[#allocation2] sm:$0xff]
      %v138 = vld [vmem:[#allocation3] sm:$0xff]
      %v139 = vadd.f32 %v137, %v138
      %140 = vst [vmem:[#allocation2] sm:$0xff] %v139
    $region25: #{tpu_custom_call.1} parent=1 // pred_fallthru
      _
    // Predicated region
    $region26: #{tpu_custom_call.1} parent=1 // pred_check
      %p141 = pneg %p38
    $region27: #{tpu_custom_call.1} parent=1 // pred_check_branch
      %143 = sbr.rel (%p141) target = $region29
    $region28: #{tpu_custom_call.1} parent=1 // pred_region
      %v144 = vld [vmem:[#allocation2] sm:$0xff]
      %145 = vst [vmem:[#allocation8] sm:$0xff] %v144
    $region29: #{tpu_custom_call.1} parent=1 // pred_fallthru
      _
    // Predicated region
    $region30: #{tpu_custom_call.1} parent=1 // pred_check
      _
    $region31: #{tpu_custom_call.1} parent=1 // pred_check_branch
      %147 = sbr.rel (0) target = $region33
    $region32: #{tpu_custom_call.1} parent=1 // pred_region
      %s149 = ssub.s32 128, 128
      %150 = vsyncadd [#allocation5], %s149
      %s152 = sshll.u32 [#allocation8], 4
      %s153 = int_to_ptr.vmem [resolvable:$true] %s152
      %155 = dma.vmem_to_hbm [thread:$0]  %s153, 128, %s2, [#allocation5]
    $region33: #{tpu_custom_call.1} parent=1 // pred_fallthru
      _
    // Predicated region
    $region34: #{tpu_custom_call.1} parent=1 // pred_check
      _
    $region35: #{tpu_custom_call.1} parent=1 // pred_check_branch
      %157 = sbr.rel (0) target = $region37
    $region36: #{tpu_custom_call.1} parent=1 // pred_region
      %158 = dma.done [#allocation5], 128
    $region37: #{tpu_custom_call.1} parent=1 // pred_fallthru
      _
    %159 = vsyncpa [#allocation4], 1
    %160 = vsyncpa [#allocation7], 1
    %161 = vsyncpa [#allocation5], 1

</llo_original>
